<compile_context>
chip_gen: v7x
topology: tpu7x:2x2x1
jax: 0.10.0
libtpu: 0.0.40
codegen_flags: <defaults>
</compile_context>

<pallas_src>
import math

import jax
import jax.numpy as jnp
from jax.experimental import pallas as pl
from jax.experimental.pallas import tpu as pltpu

HIDDEN = 128
LANE = 128          # compute width of the action head (full lane width)
SUBLANE = 8
NEG_BIG = -1e30     # effectively -inf for padded logit columns (exp -> 0)


def _round_up(x, m):
    return m * ((x + m - 1) // m)


def policy_net_kernel(x_ref, w1_ref, b1_ref, w2_ref, b2_ref, out_ref):
    """softmax(relu(x@W1 + b1) @ W2 + b2) over the last dim for one batch tile.

    W2/b2 arrive lane-padded to a multiple of 128 output columns; padded bias
    entries are NEG_BIG so padded columns contribute exp(...) == 0.  The
    output ref is narrower (round_up(action_dim, 8) columns); only its leading
    columns of the 128-wide softmax are stored.
    """
    x = x_ref[...]                                                       # [TB, S] bf16
    # fc1 + relu (MXU bf16 matmul, f32 accumulation)
    h = jnp.dot(x, w1_ref[...], preferred_element_type=jnp.float32) + b1_ref[...]
    h = jnp.maximum(h, 0.0)                                              # [TB, 128] f32
    # fc2 (lane-padded head), bf16 inputs, f32 accumulation
    logits = (jnp.dot(h.astype(jnp.bfloat16), w2_ref[...],
                      preferred_element_type=jnp.float32) + b2_ref[...])
    # numerically stable softmax over the last axis (f32 epilogue)
    m = jnp.max(logits, axis=-1, keepdims=True)
    e = jnp.exp(logits - m)                          # padded cols -> exp(-1e30) == 0
    denom = jnp.sum(e, axis=-1, keepdims=True)
    probs = e * (1.0 / denom)                        # exact reciprocal: one column, ~free
    # store only the narrow (sublane-rounded action_dim) output slab
    out_ref[...] = probs[:, : out_ref.shape[-1]].astype(out_ref.dtype)


def policy_net_forward(x, w1, b1, w2, b2, *, block_batch=2048):
    """Fused PolicyNet forward. Returns [batch, action_dim] probabilities (f32)."""
    batch, state_dim = x.shape
    hidden, action_dim = w2.shape
    assert w1.shape == (state_dim, hidden) and hidden == HIDDEN

    # --- lane-pad the action head: compute width is a multiple of 128 lanes ---
    a_comp = max(LANE, _round_up(action_dim, LANE))      # in-kernel compute width
    a_out = _round_up(action_dim, SUBLANE)               # stored output width
    pad_a = a_comp - action_dim
    if pad_a > 0:
        w2p = jnp.pad(w2, ((0, 0), (0, pad_a)))
        b2p = jnp.pad(b2, ((0, 0), (0, pad_a)), constant_values=NEG_BIG)
    else:
        w2p, b2p = w2, b2

    # --- streamed operands in bf16 (MXU-native, half the HBM/VMEM traffic) ---
    xb = x.astype(jnp.bfloat16)
    w1b = w1.astype(jnp.bfloat16)
    w2b = w2p.astype(jnp.bfloat16)

    # --- batch tiling ------------------------------------------------------
    # tb: multiple of 8 (hard (8,128) constraint), at most block_batch, and at
    # most ceil(batch/2) so that when there is enough work the grid has >= 2
    # steps and the "parallel" axis spans both TensorCores on v7x.
    half = pl.cdiv(batch, 2)
    tb = _round_up(min(block_batch, max(half, SUBLANE)), SUBLANE)
    padded_batch = _round_up(batch, tb)
    xp = (jnp.pad(xb, ((0, padded_batch - batch), (0, 0)))
          if padded_batch != batch else xb)
    grid = (padded_batch // tb,)

    # Advisory cost estimate for the XLA scheduler.
    flops = 2 * padded_batch * (state_dim * hidden + hidden * a_comp)
    bytes_accessed = (2 * padded_batch * state_dim                       # x (bf16)
                      + 2 * (state_dim * hidden + hidden * a_comp)       # weights (bf16)
                      + 4 * (hidden + a_comp)                            # biases (f32)
                      + 4 * padded_batch * a_out)                        # out (f32)
    cost = pl.CostEstimate(flops=flops,
                           transcendentals=padded_batch * a_comp,
                           bytes_accessed=bytes_accessed)

    out_padded = pl.pallas_call(
        policy_net_kernel,
        out_shape=jax.ShapeDtypeStruct((padded_batch, a_out), jnp.float32),
        grid=grid,
        in_specs=[
            pl.BlockSpec((tb, state_dim), lambda i: (i, 0)),       # streamed x tile (bf16)
            pl.BlockSpec((state_dim, hidden), lambda i: (0, 0)),   # resident W1 (bf16)
            pl.BlockSpec((1, hidden), lambda i: (0, 0)),           # resident b1 (f32)
            pl.BlockSpec((hidden, a_comp), lambda i: (0, 0)),      # resident W2 (bf16, padded)
            pl.BlockSpec((1, a_comp), lambda i: (0, 0)),           # resident b2 (f32, padded)
        ],
        out_specs=pl.BlockSpec((tb, a_out), lambda i: (i, 0)),     # narrow output tile
        compiler_params=pltpu.CompilerParams(
            dimension_semantics=("parallel",),   # shard batch tiles across TCs on v7x
        ),
        cost_estimate=cost,
    )(xp, w1b, b1, w2b, b2p)

    # Slice back to the logical shape in the wrapper (cheap XLA slice).
    return out_padded[:batch, :action_dim]


def init_policy_net_params(key, state_dim, action_dim, hidden=HIDDEN):
    """Deterministic init mimicking PyTorch nn.Linear default (uniform +/- 1/sqrt(fan_in))."""
    k1, k2, k3, k4 = jax.random.split(key, 4)
    bound1 = 1.0 / math.sqrt(state_dim)
    bound2 = 1.0 / math.sqrt(hidden)
    w1 = jax.random.uniform(k1, (state_dim, hidden), jnp.float32, -bound1, bound1)
    b1 = jax.random.uniform(k2, (1, hidden), jnp.float32, -bound1, bound1)
    w2 = jax.random.uniform(k3, (hidden, action_dim), jnp.float32, -bound2, bound2)
    b2 = jax.random.uniform(k4, (1, action_dim), jnp.float32, -bound2, bound2)
    return w1, b1, w2, b2


if __name__ == "__main__":
    key = jax.random.PRNGKey(0)
    batch, state_dim, action_dim = 4, 8, 6

    k_params, k_x = jax.random.split(key)
    w1, b1, w2, b2 = init_policy_net_params(k_params, state_dim, action_dim)
    x = jax.random.normal(k_x, (batch, state_dim), jnp.float32)

    out = policy_net_forward(x, w1, b1, w2, b2)
    out = jax.block_until_ready(out)

    # Reference mirroring the kernel numerics (bf16 matmul inputs, f32 accumulation,
    # f32 softmax) so the comparison isolates kernel bugs rather than dtype policy.
    xb, w1b, w2b = (a.astype(jnp.bfloat16) for a in (x, w1, w2))
    h_ref = jnp.maximum(
        jnp.dot(xb, w1b, preferred_element_type=jnp.float32) + b1, 0.0)
    logits_ref = jnp.dot(h_ref.astype(jnp.bfloat16), w2b,
                         preferred_element_type=jnp.float32) + b2
    ref = jax.nn.softmax(logits_ref, axis=-1)

    assert out.shape == (batch, action_dim)
    assert jnp.allclose(out, ref, atol=2e-3, rtol=1e-2)
    assert jnp.allclose(jnp.sum(out, axis=-1), 1.0, atol=1e-4)

    print("KERNEL_OK")
</pallas_src>

<mosaic_0001>
module attributes {stable_mosaic.version = 11 : i64} {
  func.func @policy_net_kernel(%arg0: i32, %arg1: memref<8x8xbf16, #tpu.memory_space<vmem>>, %arg2: memref<8x128xbf16, #tpu.memory_space<vmem>>, %arg3: memref<1x128xf32, #tpu.memory_space<vmem>>, %arg4: memref<128x128xbf16, #tpu.memory_space<vmem>>, %arg5: memref<1x128xf32, #tpu.memory_space<vmem>>, %arg6: memref<8x8xf32, #tpu.memory_space<vmem>>) attributes {dimension_semantics = [#tpu.dimension_semantics<parallel>], iteration_bounds = array<i64: 1>, scalar_prefetch = 0 : i64, scratch_operands = 0 : i64, tpu.core_type = #tpu.core_type<tc>, window_params = [{transform_indices = @transform_0, window_bounds = array<i64: 8, 8>}, {pipeline_mode = #tpu.pipeline_mode<synchronous>, transform_indices = @transform_1, window_bounds = array<i64: 8, 128>}, {pipeline_mode = #tpu.pipeline_mode<synchronous>, transform_indices = @transform_2, window_bounds = array<i64: 1, 128>}, {pipeline_mode = #tpu.pipeline_mode<synchronous>, transform_indices = @transform_3, window_bounds = array<i64: 128, 128>}, {pipeline_mode = #tpu.pipeline_mode<synchronous>, transform_indices = @transform_4, window_bounds = array<i64: 1, 128>}, {transform_indices = @transform_5, window_bounds = array<i64: 8, 8>}]} {
    %c0 = arith.constant 0 : index
    %c0_0 = arith.constant 0 : index
    %0 = vector.load %arg1[%c0, %c0_0] : memref<8x8xbf16, #tpu.memory_space<vmem>>, vector<8x8xbf16>
    %c0_1 = arith.constant 0 : index
    %c0_2 = arith.constant 0 : index
    %1 = vector.load %arg2[%c0_1, %c0_2] : memref<8x128xbf16, #tpu.memory_space<vmem>>, vector<8x128xbf16>
    %cst = arith.constant dense<0.000000e+00> : vector<8x128xf32>
    %2 = tpu.matmul %0, %1, %cst {dimension_numbers = #tpu.dot_dimension_numbers<[1], [0], [0], [1], [0, 0, 1, 1], [], []>} : vector<8x8xbf16>, vector<8x128xbf16>, vector<8x128xf32> -> vector<8x128xf32>
    %c0_3 = arith.constant 0 : index
    %c0_4 = arith.constant 0 : index
    %3 = vector.load %arg3[%c0_3, %c0_4] : memref<1x128xf32, #tpu.memory_space<vmem>>, vector<1x128xf32>
    %4 = vector.broadcast %3 : vector<1x128xf32> to vector<8x128xf32>
    %5 = arith.addf %2, %4 : vector<8x128xf32>
    %cst_5 = arith.constant 0.000000e+00 : f32
    %6 = vector.broadcast %cst_5 : f32 to vector<8x128xf32>
    %7 = arith.maximumf %5, %6 : vector<8x128xf32>
    %8 = arith.truncf %7 : vector<8x128xf32> to vector<8x128xbf16>
    %c0_6 = arith.constant 0 : index
    %c0_7 = arith.constant 0 : index
    %9 = vector.load %arg4[%c0_6, %c0_7] : memref<128x128xbf16, #tpu.memory_space<vmem>>, vector<128x128xbf16>
    %cst_8 = arith.constant dense<0.000000e+00> : vector<8x128xf32>
    %10 = tpu.matmul %8, %9, %cst_8 {dimension_numbers = #tpu.dot_dimension_numbers<[1], [0], [0], [1], [0, 0, 1, 1], [], []>} : vector<8x128xbf16>, vector<128x128xbf16>, vector<8x128xf32> -> vector<8x128xf32>
    %c0_9 = arith.constant 0 : index
    %c0_10 = arith.constant 0 : index
    %11 = vector.load %arg5[%c0_9, %c0_10] : memref<1x128xf32, #tpu.memory_space<vmem>>, vector<1x128xf32>
    %12 = vector.broadcast %11 : vector<1x128xf32> to vector<8x128xf32>
    %13 = arith.addf %10, %12 : vector<8x128xf32>
    %cst_11 = arith.constant dense<0xFF800000> : vector<8xf32>
    %14 = vector.multi_reduction <maximumf>, %13, %cst_11 [1] : vector<8x128xf32> to vector<8xf32>
    %15 = vector.shape_cast %14 : vector<8xf32> to vector<8x1xf32>
    %16 = vector.broadcast %15 : vector<8x1xf32> to vector<8x128xf32>
    %17 = arith.subf %13, %16 : vector<8x128xf32>
    %18 = math.exp %17 : vector<8x128xf32>
    %cst_12 = arith.constant dense<0.000000e+00> : vector<8xf32>
    %19 = vector.multi_reduction <add>, %18, %cst_12 [1] : vector<8x128xf32> to vector<8xf32>
    %20 = vector.shape_cast %19 : vector<8xf32> to vector<8x1xf32>
    %cst_13 = arith.constant 1.000000e+00 : f32
    %21 = vector.broadcast %cst_13 : f32 to vector<8x1xf32>
    %22 = arith.divf %21, %20 : vector<8x1xf32>
    %23 = vector.broadcast %22 : vector<8x1xf32> to vector<8x128xf32>
    %24 = arith.mulf %18, %23 : vector<8x128xf32>
    %25 = vector.extract_strided_slice %24 {offsets = [0, 0], sizes = [8, 8], strides = [1, 1]} : vector<8x128xf32> to vector<8x8xf32>
    %c0_14 = arith.constant 0 : index
    %c0_15 = arith.constant 0 : index
    %26 = vector.load %arg6[%c0_14, %c0_15] : memref<8x8xf32, #tpu.memory_space<vmem>>, vector<8x8xf32>
    tpu.vector_store %arg6[%c0_14, %c0_15], %25 {strides = array<i32>} : memref<8x8xf32, #tpu.memory_space<vmem>>, vector<8x8xf32>,
    return
  }
  func.func @transform_0(%arg0: i32) -> (i32, i32) {
    %c0_i32 = arith.constant 0 : i32
    %c0_i32_0 = arith.constant 0 : i32
    return %arg0, %c0_i32 : i32, i32
  }
  func.func @transform_1(%arg0: i32) -> (i32, i32) {
    %c0_i32 = arith.constant 0 : i32
    %c0_i32_0 = arith.constant 0 : i32
    %c0_i32_1 = arith.constant 0 : i32
    return %c0_i32, %c0_i32_0 : i32, i32
  }
  func.func @transform_2(%arg0: i32) -> (i32, i32) {
    %c0_i32 = arith.constant 0 : i32
    %c0_i32_0 = arith.constant 0 : i32
    %c0_i32_1 = arith.constant 0 : i32
    return %c0_i32, %c0_i32_0 : i32, i32
  }
  func.func @transform_3(%arg0: i32) -> (i32, i32) {
    %c0_i32 = arith.constant 0 : i32
    %c0_i32_0 = arith.constant 0 : i32
    %c0_i32_1 = arith.constant 0 : i32
    return %c0_i32, %c0_i32_0 : i32, i32
  }
  func.func @transform_4(%arg0: i32) -> (i32, i32) {
    %c0_i32 = arith.constant 0 : i32
    %c0_i32_0 = arith.constant 0 : i32
    %c0_i32_1 = arith.constant 0 : i32
    return %c0_i32, %c0_i32_0 : i32, i32
  }
  func.func @transform_5(%arg0: i32) -> (i32, i32) {
    %c0_i32 = arith.constant 0 : i32
    %c0_i32_0 = arith.constant 0 : i32
    return %arg0, %c0_i32 : i32, i32
  }
}

</mosaic_0001>

<llo_original>
// kernel: tpu_custom_call.1
$region0: #{tpu_custom_call.1}
  #allocation0 [shape = 'u32[]', space=smem, size = 0x4, offset = 0x4, fixed_abs, tag = 'smem constant byte address 0x4 - core index']
  #allocation1 [shape = 'u32[144,128]{1,0:T(1,128)}', space=vmem, size = 0x12000, scoped, tag = 'internal scratch']
  %s0 = inlined_call_operand.hbm [shape: bf16[8,8], index: 0, kind: input, shape index: {}]
  %s1 = inlined_call_operand.hbm [shape: bf16[8,128], index: 1, kind: input, shape index: {}]
  %s2 = inlined_call_operand.vmem [shape: f32[1,128], index: 2, kind: input, shape index: {}]
  %s3 = inlined_call_operand.hbm [shape: bf16[128,128], index: 3, kind: input, shape index: {}]
  %s4 = inlined_call_operand.vmem [shape: f32[1,128], index: 4, kind: input, shape index: {}]
  %s5 = inlined_call_operand.hbm [shape: f32[8,8], index: 5, kind: output, shape index: {}]
  %s6 = sld [smem:[#allocation0]]
  $region42: #{tpu_custom_call.1} parent=0
    _
  %s8 = ssub.s32 1, %s6
  %s9 = scalar_select 0, %s8, %s6
  $region1: #{tpu_custom_call.1} parent=0
    #allocation2 [shape = 'u8[2048]{0}', space=vmem, size = 0x800, scoped, tag = 'input window, operand 0, single buffered']
    #allocation3 [shape = 's32[1]{0}', space=sflag, size = 0x4, scoped, tag = 'scoped memory for tpu_custom_call.1']
    #allocation4 [shape = 's32[1]{0}', space=sflag, size = 0x4, scoped, tag = 'scoped memory for tpu_custom_call.1']
    #allocation5 [shape = 'u8[2048]{0}', space=vmem, size = 0x800, scoped, tag = 'input window, operand 1, single buffered']
    #allocation6 [shape = 's32[1]{0}', space=sflag, size = 0x4, scoped, tag = 'scoped memory for tpu_custom_call.1']
    #allocation7 [shape = 'u8[32768]{0}', space=vmem, size = 0x8000, scoped, tag = 'input window, operand 3, single buffered']
    #allocation8 [shape = 'u8[4096]{0}', space=vmem, size = 0x1000, scoped, tag = 'output window, operand 0, single buffered']
    %10 = vsyncpa [#allocation3], 0
    %11 = vsyncpa [#allocation6], 0
    %12 = vsyncpa [#allocation4], 0
    // Predicated region
    $region2: #{tpu_custom_call.1} parent=1 // pred_check
      _
    $region3: #{tpu_custom_call.1} parent=1 // pred_check_branch
      %14 = sbr.rel (0) target = $region5
    $region4: #{tpu_custom_call.1} parent=1 // pred_region
      %s16 = ssub.s32 64, 64
      %17 = vsyncadd [#allocation3], %s16
      %s19 = sshll.u32 [#allocation2], 4
      %s20 = int_to_ptr.vmem [resolvable:$true] %s19
      %22 = dma.hbm_to_vmem [thread:$0]  %s0, 64, %s20, [#allocation3]
    $region5: #{tpu_custom_call.1} parent=1 // pred_fallthru
      _
    // Predicated region
    $region6: #{tpu_custom_call.1} parent=1 // pred_check
      _
    $region7: #{tpu_custom_call.1} parent=1 // pred_check_branch
      %24 = sbr.rel (0) target = $region9
    $region8: #{tpu_custom_call.1} parent=1 // pred_region
      %s26 = ssub.s32 64, 64
      %27 = vsyncadd [#allocation6], %s26
      %s29 = sshll.u32 [#allocation5], 4
      %s30 = int_to_ptr.vmem [resolvable:$true] %s29
      %32 = dma.hbm_to_vmem [thread:$0]  %s1, 64, %s30, [#allocation6]
    $region9: #{tpu_custom_call.1} parent=1 // pred_fallthru
      _
    // Predicated region
    $region10: #{tpu_custom_call.1} parent=1 // pred_check
      _
    $region11: #{tpu_custom_call.1} parent=1 // pred_check_branch
      %34 = sbr.rel (0) target = $region13
    $region12: #{tpu_custom_call.1} parent=1 // pred_region
      _
    $region13: #{tpu_custom_call.1} parent=1 // pred_fallthru
      _
    // Predicated region
    $region14: #{tpu_custom_call.1} parent=1 // pred_check
      _
    $region15: #{tpu_custom_call.1} parent=1 // pred_check_branch
      %36 = sbr.rel (0) target = $region17
    $region16: #{tpu_custom_call.1} parent=1 // pred_region
      %s38 = ssub.s32 1024, 1024
      %39 = vsyncadd [#allocation6], %s38
      %s40 = sshll.u32 [#allocation7], 4
      %s41 = int_to_ptr.vmem [resolvable:$true] %s40
      %46 = dma.hbm_to_vmem [thread:$0]  %s3, 1024, %s41, [#allocation6], 64, 64, 4
    $region17: #{tpu_custom_call.1} parent=1 // pred_fallthru
      _
    // Predicated region
    $region18: #{tpu_custom_call.1} parent=1 // pred_check
      _
    $region19: #{tpu_custom_call.1} parent=1 // pred_check_branch
      %48 = sbr.rel (0) target = $region21
    $region20: #{tpu_custom_call.1} parent=1 // pred_region
      _
    $region21: #{tpu_custom_call.1} parent=1 // pred_fallthru
      _
    // Predicated region
    $region22: #{tpu_custom_call.1} parent=1 // pred_check
      _
    $region23: #{tpu_custom_call.1} parent=1 // pred_check_branch
      %50 = sbr.rel (0) target = $region25
    $region24: #{tpu_custom_call.1} parent=1 // pred_region
      %51 = dma.done [#allocation3], 64
    $region25: #{tpu_custom_call.1} parent=1 // pred_fallthru
      _
    // Predicated region
    $region26: #{tpu_custom_call.1} parent=1 // pred_check
      _
    $region27: #{tpu_custom_call.1} parent=1 // pred_check_branch
      %53 = sbr.rel (0) target = $region29
    $region28: #{tpu_custom_call.1} parent=1 // pred_region
      %54 = dma.done [#allocation6], 64
    $region29: #{tpu_custom_call.1} parent=1 // pred_fallthru
      _
    // Predicated region
    $region30: #{tpu_custom_call.1} parent=1 // pred_check
      _
    $region31: #{tpu_custom_call.1} parent=1 // pred_check_branch
      %56 = sbr.rel (0) target = $region33
    $region32: #{tpu_custom_call.1} parent=1 // pred_region
      %57 = dma.done [#allocation6], 1024
    $region33: #{tpu_custom_call.1} parent=1 // pred_fallthru
      _
    %v59 = vld [vmem:[#allocation2] sm:$0xf]
    %v60 = vld [vmem:[#allocation5] sm:$0xf]
    %v61 = vld [vmem:[%s2] sm:$0x1]
    %v63 = vlaneseq
    %v64 = vshrl.u32 %v63, 7
    %v65 = vsub.s32 0, %v64
    %v66 = vrot.slane %v61, %v65
    %vm68 = vcmask 64512
    %v70 = vsel %vm68, %v59, 0
    %vm72 = vcmask 1043456
    %v74 = vsel %vm72, %v60, 0
    %76 = vmatprep.subr.bf16.mxu0 0
    %77 = vmatpush1.bf16.msra.mxu0 %v74
    %78 = vmatprep.subr.bf16.mxu0 0
    %79 = vmatpush1.bf16.msra.mxu0 0
    %80 = vmatprep.subr.bf16.mxu0 0
    %81 = vmatpush1.bf16.msra.mxu0 0
    %82 = vmatprep.subr.bf16.mxu0 0
    %83 = vmatpush1.bf16.msra.mxu0 0
    %84 = vmatprep.subr.bf16.mxu0 0
    %85 = vmatpush1.bf16.msra.mxu0 0
    %86 = vmatprep.subr.bf16.mxu0 0
    %87 = vmatpush1.bf16.msra.mxu0 0
    %88 = vmatprep.subr.bf16.mxu0 0
    %89 = vmatpush1.bf16.msra.mxu0 0
    %90 = vmatprep.subr.bf16.mxu0 0
    %91 = vmatpush1.bf16.msra.mxu0 0
    %92 = vmatprep.subr.bf16.mxu0 0
    %93 = vmatpush1.bf16.msra.mxu0 0
    %94 = vmatprep.subr.bf16.mxu0 0
    %95 = vmatpush1.bf16.msra.mxu0 0
    %96 = vmatprep.subr.bf16.mxu0 0
    %97 = vmatpush1.bf16.msra.mxu0 0
    %98 = vmatprep.subr.bf16.mxu0 0
    %99 = vmatpush1.bf16.msra.mxu0 0
    %100 = vmatprep.subr.bf16.mxu0 0
    %101 = vmatpush1.bf16.msra.mxu0 0
    %102 = vmatprep.subr.bf16.mxu0 0
    %103 = vmatpush1.bf16.msra.mxu0 0
    %104 = vmatprep.subr.bf16.mxu0 0
    %105 = vmatpush1.bf16.msra.mxu0 0
    %106 = vmatprep.subr.bf16.mxu0 0
    %107 = vmatpush1.bf16.msra.mxu0 0
    %108 = vmatprep.mubr.bf16.mxu0 0
    %109 = vmatmul.mubr.bf16.gmra.mrb[0].mxu0 %v70
    %v110 = vpop.f32.mrb[0].mxu0
    %v111 = vadd.f32 %v66, %v110
    %v112 = vpop.f32.mrb[0].mxu0
    %v113 = vpop.f32.mrb[0].mxu0
    %v114 = vpop.f32.mrb[0].mxu0
    %115 = vdwg.mxu0
    %v116 = vmax.f32 %v111, 0.0
    %v117 = vpack.c.bf16 %v116, %v116
    %v118 = vld [vmem:[#allocation7] sm:$0xf]
    %v119 = vld [vmem:[#allocation7 + $0x4] sm:$0xf]
    %v120 = vld [vmem:[#allocation7 + $0x8] sm:$0xf]
    %v121 = vld [vmem:[#allocation7 + $0xc] sm:$0xf]
    %v122 = vld [vmem:[#allocation7 + $0x10] sm:$0xf]
    %v123 = vld [vmem:[#allocation7 + $0x14] sm:$0xf]
    %v124 = vld [vmem:[#allocation7 + $0x18] sm:$0xf]
    %v125 = vld [vmem:[#allocation7 + $0x1c] sm:$0xf]
    %v126 = vld [vmem:[#allocation7 + $0x20] sm:$0xf]
    %v127 = vld [vmem:[#allocation7 + $0x24] sm:$0xf]
    %v128 = vld [vmem:[#allocation7 + $0x28] sm:$0xf]
    %v129 = vld [vmem:[#allocation7 + $0x2c] sm:$0xf]
    %v130 = vld [vmem:[#allocation7 + $0x30] sm:$0xf]
    %v131 = vld [vmem:[#allocation7 + $0x34] sm:$0xf]
    %v132 = vld [vmem:[#allocation7 + $0x38] sm:$0xf]
    %v133 = vld [vmem:[#allocation7 + $0x3c] sm:$0xf]
    %v134 = vld [vmem:[%s4] sm:$0x1]
    %v136 = vlaneseq
    %v137 = vshrl.u32 %v136, 7
    %v138 = vsub.s32 0, %v137
    %v139 = vrot.slane %v134, %v138
    %v157 = vunpack.c.l.b16 %v118
    %v158 = vunpack.c.l.b16 %v119
    %v159 = vunpack.c.l.b16 %v120
    %v160 = vunpack.c.l.b16 %v121
    %v161 = vunpack.c.l.b16 %v122
    %v162 = vunpack.c.l.b16 %v123
    %v163 = vunpack.c.l.b16 %v124
    %v164 = vunpack.c.l.b16 %v125
    %v165 = vunpack.c.l.b16 %v126
    %v166 = vunpack.c.l.b16 %v127
    %v167 = vunpack.c.l.b16 %v128
    %v168 = vunpack.c.l.b16 %v129
    %v169 = vunpack.c.l.b16 %v130
    %v170 = vunpack.c.l.b16 %v131
    %v171 = vunpack.c.l.b16 %v132
    %v172 = vunpack.c.l.b16 %v133
    %v173 = vpack.c.b16 %v158, %v157
    %v174 = vpack.c.b16 %v160, %v159
    %v175 = vpack.c.b16 %v162, %v161
    %v176 = vpack.c.b16 %v164, %v163
    %v177 = vpack.c.b16 %v166, %v165
    %v178 = vpack.c.b16 %v168, %v167
    %v179 = vpack.c.b16 %v170, %v169
    %v180 = vpack.c.b16 %v172, %v171
    %189 = vmatprep.subr.bf16.mxu0 0
    %190 = vmatpush1.bf16.msra.mxu0 %v173
    %191 = vmatprep.subr.bf16.mxu0 0
    %192 = vmatpush1.bf16.msra.mxu0 %v174
    %193 = vmatprep.subr.bf16.mxu0 0
    %194 = vmatpush1.bf16.msra.mxu0 %v175
    %195 = vmatprep.subr.bf16.mxu0 0
    %196 = vmatpush1.bf16.msra.mxu0 %v176
    %197 = vmatprep.subr.bf16.mxu0 0
    %198 = vmatpush1.bf16.msra.mxu0 %v177
    %199 = vmatprep.subr.bf16.mxu0 0
    %200 = vmatpush1.bf16.msra.mxu0 %v178
    %201 = vmatprep.subr.bf16.mxu0 0
    %202 = vmatpush1.bf16.msra.mxu0 %v179
    %203 = vmatprep.subr.bf16.mxu0 0
    %204 = vmatpush1.bf16.msra.mxu0 %v180
    %205 = vmatprep.subr.bf16.mxu0 0
    %206 = vmatpush1.bf16.msra.mxu0 0
    %207 = vmatprep.subr.bf16.mxu0 0
    %208 = vmatpush1.bf16.msra.mxu0 0
    %209 = vmatprep.subr.bf16.mxu0 0
    %210 = vmatpush1.bf16.msra.mxu0 0
    %211 = vmatprep.subr.bf16.mxu0 0
    %212 = vmatpush1.bf16.msra.mxu0 0
    %213 = vmatprep.subr.bf16.mxu0 0
    %214 = vmatpush1.bf16.msra.mxu0 0
    %215 = vmatprep.subr.bf16.mxu0 0
    %216 = vmatpush1.bf16.msra.mxu0 0
    %217 = vmatprep.subr.bf16.mxu0 0
    %218 = vmatpush1.bf16.msra.mxu0 0
    %219 = vmatprep.subr.bf16.mxu0 0
    %220 = vmatpush1.bf16.msra.mxu0 0
    %221 = vmatprep.mubr.bf16.mxu0 0
    %222 = vmatmul.mubr.bf16.gmra.mrb[0].mxu0 %v117
    %v223 = vpop.f32.mrb[0].mxu0
    %v224 = vadd.f32 %v139, %v223
    %v225 = vpop.f32.mrb[0].mxu0
    %v226 = vpop.f32.mrb[0].mxu0
    %v227 = vpop.f32.mrb[0].mxu0
    %228 = vdwg.mxu0
    %229 = vmax.xlane.f32.xlu0 %v224
    %v230 = vpop.xlane.xlu0 %229
    %v231 = vsub.f32 %v224, %v230
    %v232 = vmul.f32 %v231, 1.442695
    %v233 = vpow.pop %v232
    %234 = vadd.xlane.f32.xlu0 %v233
    %v235 = vpop.xlane.xlu0 %234
    %v236 = vrcp.pop %v235
    %v237 = vmul.f32 1.0, %v236
    %v238 = vmul.f32 %v233, %v237
    %239 = vst.msk [vmem:[#allocation8] sm:$0xff] %vm68, %v238
    // Predicated region
    $region34: #{tpu_custom_call.1} parent=1 // pred_check
      _
    $region35: #{tpu_custom_call.1} parent=1 // pred_check_branch
      %241 = sbr.rel (0) target = $region37
    $region36: #{tpu_custom_call.1} parent=1 // pred_region
      %s243 = ssub.s32 128, 128
      %244 = vsyncadd [#allocation4], %s243
      %s246 = sshll.u32 [#allocation8], 4
      %s247 = int_to_ptr.vmem [resolvable:$true] %s246
      %249 = dma.vmem_to_hbm [thread:$0]  %s247, 128, %s5, [#allocation4]
    $region37: #{tpu_custom_call.1} parent=1 // pred_fallthru
      _
    // Predicated region
    $region38: #{tpu_custom_call.1} parent=1 // pred_check
      _
    $region39: #{tpu_custom_call.1} parent=1 // pred_check_branch
      %251 = sbr.rel (0) target = $region41
    $region40: #{tpu_custom_call.1} parent=1 // pred_region
      %252 = dma.done [#allocation4], 128
    $region41: #{tpu_custom_call.1} parent=1 // pred_fallthru
      _
    %253 = vsyncpa [#allocation3], 1
    %254 = vsyncpa [#allocation6], 1
    %255 = vsyncpa [#allocation4], 1

</llo_original>
